<compile_context>
chip_gen: v7x
topology: tpu7x:2x2x1
jax: 0.10.0
libtpu: 0.0.40
codegen_flags: <defaults>
</compile_context>

<pallas_src>
import functools

import jax
import jax.numpy as jnp
from jax import lax
from jax.experimental import pallas as pl
from jax.experimental.pallas import tpu as pltpu


def _entropy_kernel(x_ref, out_ref, *, ita, hw, thw):
    """One grid step = one (batch, pixel-tile) cell.

    x_ref   : VMEM, (1, C, THW) logits tile (native dtype)
    out_ref : VMEM, (1, 1, 8, 128) per-tile partial sum (only [...,0,0] used)
    """
    j = pl.program_id(1)                                   # pixel-tile index

    x = x_ref[0].astype(jnp.float32)                       # (C, THW)

    # Numerically-stable softmax pieces over channels (sublane axis, per lane).
    mx = jnp.max(x, axis=0, keepdims=True)                 # (1, THW)
    xm = x - mx                                            # (C, THW), <= 0
    e = jnp.exp(xm)                                        # (C, THW)
    s = jnp.sum(e, axis=0, keepdims=True)                  # (1, THW)
    sxm = jnp.sum(e * xm, axis=0, keepdims=True)           # (1, THW)

    # sum_c p*log p = sxm / s - log(s)  =>  ent = -sum_c p*log p
    # (exact reciprocal: kernel is HBM-bound, the extra Newton step is free)
    ent = jnp.log(s) - sxm * pl.reciprocal(s, approx=False)  # (1, THW), >= 0

    # ((ent / 2.9444) ** 2 + 1e-8) ** ita, with 1/2.9444**2 pre-folded.
    inv_sq = 1.0 / (2.9444 * 2.9444)
    t = ent * ent * inv_sq + 1e-8
    ita_f = float(ita)
    if ita_f == int(ita_f) and abs(ita_f) <= 32:
        t = lax.integer_pow(t, int(ita_f))                 # exact, no EUP exp/log
    else:
        t = jnp.exp(ita_f * jnp.log(t))                    # t > 0 always

    # Mask padded lanes of the ragged last tile (compile-time decision; only
    # emitted when hw is actually split into tiles that don't divide it).
    if hw % thw != 0:
        lane = lax.broadcasted_iota(jnp.int32, (1, thw), 1) + j * thw
        t = jnp.where(lane < hw, t, 0.0)

    total = jnp.sum(t)                                     # scalar partial sum

    # Store the partial sum in element (0, 0) of the (8, 128) output block,
    # zeros elsewhere, via a single full-block vector store (lane-dense).
    row = lax.broadcasted_iota(jnp.int32, (8, 128), 0)
    col = lax.broadcasted_iota(jnp.int32, (8, 128), 1)
    out_ref[0, 0] = jnp.where((row == 0) & (col == 0), total, 0.0)


def entropy_minimization_loss(x, ita):
    """x: (N, C, H, W) array (any float dtype), ita: python float. Scalar loss."""
    n, c, h, w = x.shape
    hw = h * w
    m_total = n * hw

    # Free, contiguous reshape — no transpose, no dtype cast in HBM.
    x3 = x.reshape(n, c, hw)

    # Largest lane tile that keeps the 2x-buffered input under ~8 MiB (safe on
    # v5e 16 MiB / v6e 32 MiB / v7x 32 MiB scoped-VMEM defaults), capped at
    # 16384 lanes. If the whole pixel axis fits in one tile, use it exactly
    # (block lane dim == full array dim -> always layout-legal, no masking);
    # otherwise use a multiple of 128 and mask the ragged last tile.
    itemsize = jnp.dtype(x.dtype).itemsize
    budget = 8 * 1024 * 1024
    cap = max(128, (budget // (2 * c * itemsize)) // 128 * 128)
    max_tile = int(min(16384, cap))
    if hw <= max_tile:
        thw = hw
    else:
        thw = max_tile                                     # multiple of 128
    num_j = -(-hw // thw)                                  # cdiv

    kernel = functools.partial(_entropy_kernel, ita=float(ita), hw=hw, thw=thw)

    # Per-(batch, tile) partial sums; both grid axes are independent, so both
    # are "parallel" (lets v7x shard across its two TensorCores). Output
    # traffic is 4 KiB per tile vs. up to ~MiBs of input per tile, so the
    # padded (8,128) partial-sum block is negligible overhead.
    out = pl.pallas_call(
        kernel,
        out_shape=jax.ShapeDtypeStruct((n, num_j, 8, 128), jnp.float32),
        grid=(n, num_j),
        in_specs=[
            pl.BlockSpec((1, c, thw), lambda b, j: (b, 0, j)),
        ],
        out_specs=pl.BlockSpec((1, 1, 8, 128), lambda b, j: (b, j, 0, 0)),
        compiler_params=pltpu.CompilerParams(
            dimension_semantics=("parallel", "parallel")),
    )(x3)

    return jnp.sum(out) / jnp.float32(m_total)


def _reference(x, ita):
    x = x.astype(jnp.float32)
    p = jax.nn.softmax(x, axis=1)
    logp = jax.nn.log_softmax(x, axis=1)
    ent = -1.0 * jnp.sum(p * logp, axis=1)
    ent = ent / 2.9444
    ent = ent ** 2.0 + 1e-8
    ent = ent ** ita
    return jnp.mean(ent)


if __name__ == "__main__":
    key = jax.random.PRNGKey(0)
    n, c, h, w = 2, 4, 16, 16
    x = jax.random.normal(key, (n, c, h, w), dtype=jnp.float32)
    ita = 2.0

    loss = entropy_minimization_loss(x, ita)
    jax.block_until_ready(loss)

    ref = _reference(x, ita)
    assert jnp.allclose(loss, ref, rtol=1e-4, atol=1e-6), (loss, ref)
    print("KERNEL_OK")
</pallas_src>

<mosaic_0001>
module attributes {stable_mosaic.version = 11 : i64} {
  func.func @_entropy_kernel(%arg0: i32, %arg1: i32, %arg2: memref<1x4x256xf32, #tpu.memory_space<vmem>>, %arg3: memref<1x1x8x128xf32, #tpu.memory_space<vmem>>) attributes {dimension_semantics = [#tpu.dimension_semantics<parallel>, #tpu.dimension_semantics<parallel>], iteration_bounds = array<i64: 2, 1>, scalar_prefetch = 0 : i64, scratch_operands = 0 : i64, tpu.core_type = #tpu.core_type<tc>, window_params = [{transform_indices = @transform_0, window_bounds = array<i64: 1, 4, 256>}, {transform_indices = @transform_1, window_bounds = array<i64: 1, 1, 8, 128>}]} {
    %c0 = arith.constant 0 : index
    %c0_0 = arith.constant 0 : index
    %c0_1 = arith.constant 0 : index
    %0 = vector.load %arg2[%c0, %c0_0, %c0_1] : memref<1x4x256xf32, #tpu.memory_space<vmem>>, vector<1x4x256xf32>
    %1 = vector.shape_cast %0 : vector<1x4x256xf32> to vector<4x256xf32>
    %cst = arith.constant dense<0xFF800000> : vector<256xf32>
    %2 = vector.multi_reduction <maximumf>, %1, %cst [0] : vector<4x256xf32> to vector<256xf32>
    %3 = vector.shape_cast %2 : vector<256xf32> to vector<1x256xf32>
    %4 = vector.broadcast %3 : vector<1x256xf32> to vector<4x256xf32>
    %5 = arith.subf %1, %4 : vector<4x256xf32>
    %6 = math.exp %5 : vector<4x256xf32>
    %cst_2 = arith.constant dense<0.000000e+00> : vector<256xf32>
    %7 = vector.multi_reduction <add>, %6, %cst_2 [0] : vector<4x256xf32> to vector<256xf32>
    %8 = vector.shape_cast %7 : vector<256xf32> to vector<1x256xf32>
    %9 = arith.mulf %6, %5 : vector<4x256xf32>
    %cst_3 = arith.constant dense<0.000000e+00> : vector<256xf32>
    %10 = vector.multi_reduction <add>, %9, %cst_3 [0] : vector<4x256xf32> to vector<256xf32>
    %11 = vector.shape_cast %10 : vector<256xf32> to vector<1x256xf32>
    %12 = math.log %8 : vector<1x256xf32>
    %13 = tpu.reciprocal %8 : vector<1x256xf32> -> vector<1x256xf32>
    %14 = arith.mulf %11, %13 : vector<1x256xf32>
    %15 = arith.subf %12, %14 : vector<1x256xf32>
    %16 = arith.mulf %15, %15 : vector<1x256xf32>
    %cst_4 = arith.constant 0.11534702 : f32
    %17 = vector.broadcast %cst_4 : f32 to vector<1x256xf32>
    %18 = arith.mulf %16, %17 : vector<1x256xf32>
    %cst_5 = arith.constant 9.99999993E-9 : f32
    %19 = vector.broadcast %cst_5 : f32 to vector<1x256xf32>
    %20 = arith.addf %18, %19 : vector<1x256xf32>
    %21 = arith.mulf %20, %20 : vector<1x256xf32>
    %22 = vector.shape_cast %21 : vector<1x256xf32> to vector<1x1x256xf32>
    %cst_6 = arith.constant dense<0.000000e+00> : vector<1xf32>
    %23 = vector.multi_reduction <add>, %22, %cst_6 [1, 2] : vector<1x1x256xf32> to vector<1xf32>
    %24 = vector.shape_cast %23 : vector<1xf32> to vector<1x1x1xf32>
    %25 = vector.extract %24[0, 0, 0] : f32 from vector<1x1x1xf32>
    %26 = tpu.iota {dimensions = array<i32: 0>} : vector<8x128xi32>
    %27 = tpu.iota {dimensions = array<i32: 1>} : vector<8x128xi32>
    %c0_i32 = arith.constant 0 : i32
    %28 = vector.broadcast %c0_i32 : i32 to vector<8x128xi32>
    %29 = arith.cmpi eq, %26, %28 : vector<8x128xi32>
    %c0_i32_7 = arith.constant 0 : i32
    %30 = vector.broadcast %c0_i32_7 : i32 to vector<8x128xi32>
    %31 = arith.cmpi eq, %27, %30 : vector<8x128xi32>
    %32 = arith.andi %29, %31 : vector<8x128xi1>
    %cst_8 = arith.constant 0.000000e+00 : f32
    %33 = vector.broadcast %25 : f32 to vector<8x128xf32>
    %34 = vector.broadcast %cst_8 : f32 to vector<8x128xf32>
    %35 = arith.select %32, %33, %34 : vector<8x128xi1>, vector<8x128xf32>
    %c0_9 = arith.constant 0 : index
    %c0_10 = arith.constant 0 : index
    %c0_11 = arith.constant 0 : index
    %c0_12 = arith.constant 0 : index
    %36 = vector.load %arg3[%c0_9, %c0_10, %c0_11, %c0_12] : memref<1x1x8x128xf32, #tpu.memory_space<vmem>>, vector<1x1x8x128xf32>
    %37 = vector.shape_cast %36 : vector<1x1x8x128xf32> to vector<8x128xf32>
    %38 = vector.shape_cast %35 : vector<8x128xf32> to vector<1x1x8x128xf32>
    tpu.vector_store %arg3[%c0_9, %c0_10, %c0_11, %c0_12], %38 {strides = array<i32>} : memref<1x1x8x128xf32, #tpu.memory_space<vmem>>, vector<1x1x8x128xf32>,
    return
  }
  func.func @transform_0(%arg0: i32, %arg1: i32) -> (i32, i32, i32) {
    %c0_i32 = arith.constant 0 : i32
    %c0_i32_0 = arith.constant 0 : i32
    return %arg0, %c0_i32, %arg1 : i32, i32, i32
  }
  func.func @transform_1(%arg0: i32, %arg1: i32) -> (i32, i32, i32, i32) {
    %c0_i32 = arith.constant 0 : i32
    %c0_i32_0 = arith.constant 0 : i32
    %c0_i32_1 = arith.constant 0 : i32
    return %arg0, %arg1, %c0_i32, %c0_i32_0 : i32, i32, i32, i32
  }
}

</mosaic_0001>

<llo_original>
// kernel: tpu_custom_call.1
$region0: #{tpu_custom_call.1}
  #allocation0 [shape = 'u32[]', space=smem, size = 0x4, offset = 0x4, fixed_abs, tag = 'smem constant byte address 0x4 - core index']
  #allocation1 [shape = 'u32[144,128]{1,0:T(1,128)}', space=vmem, size = 0x12000, scoped, tag = 'internal scratch']
  %s0 = inlined_call_operand.hbm [shape: f32[2,4,256], index: 0, kind: input, shape index: {}]
  %s1 = inlined_call_operand.hbm [shape: f32[2,1,8,128], index: 1, kind: output, shape index: {}]
  %s2 = sld [smem:[#allocation0]]
  $region41: #{tpu_custom_call.1} parent=0
    _
  %s4 = ssub.s32 1, %s2
  %s5 = scalar_select 0, %s4, %s2
  $region1: #{tpu_custom_call.1} parent=0
    #allocation2 [shape = 'u8[8192]{0}', space=vmem, size = 0x2000, scoped, tag = 'input window, operand 0']
    #allocation3 [shape = 's32[2]{0}', space=sflag, size = 0x8, scoped, tag = 'scoped memory for tpu_custom_call.1']
    #allocation4 [shape = 's32[2]{0}', space=sflag, size = 0x8, scoped, tag = 'scoped memory for tpu_custom_call.1']
    #allocation5 [shape = 'u8[8192]{0}', space=vmem, size = 0x2000, scoped, tag = 'output window, operand 0']
    %6 = vsyncpa [#allocation3], 0
    %s7 = scalar_lea.sflag [#allocation3], 1
    %8 = vsyncpa %s7, 0
    %9 = vsyncpa [#allocation4], 0
    %s10 = scalar_lea.sflag [#allocation4], 1
    %11 = vsyncpa %s10, 0
    loop: start=0, step=1, limit=4
    $region2: #{tpu_custom_call.1} parent=1 // loop_pre_header
      _
    $region3: #{tpu_custom_call.1} parent=1 // loop_header
      %s13 = sphi 0, %s17
      %p14 = scmp.ge.s32.totalorder %s13, 4
      %s20 = sphi 0, %s32
      %s21 = sphi 0, %s28
      %s22 = sphi 0, %s20
      %s23 = sphi 0, %s21
      %s24 = sphi 0, %s22
      %s25 = sphi 0, %s23
      %s37 = sphi 0, %s39
      %s40 = sphi 0, %s37
      %s41 = sphi 0, %s40
      %s57 = sphi 0, %s41
      %s65 = sphi 0, %s67
      %s68 = sphi 0, %s65
      %s69 = sphi 0, %s68
      %s85 = sphi 0, %s69
    $region4: #{tpu_custom_call.1} parent=1 // loop_header_branch
      %16 = sbr.rel (%p14) target = $region8
    $region5: #{tpu_custom_call.1} parent=1 // loop_body
      %s18 = ssub.s32 %s13, 1
      %s19 = ssub.s32 %s13, 2
      %s26 = sadd.s32 1, %s21
      %p27 = scmp.ge.s32.totalorder %s26, 1
      %s28 = scalar_select %p27, 0, %s26
      %s29 = sadd.s32 1, %s20
      %s30 = scalar_select %p27, %s29, %s20
      %p31 = scmp.ge.s32.totalorder %s30, 2
      %s32 = scalar_select %p31, 0, %s30
      %s33 = ssub.s32 %s20, %s32
      %s34 = ssub.s32 %s21, %s28
      %s35 = sor.u32 %s33, %s34
      %p36 = scmp.eq.s32.totalorder %s35, 0
      %s38 = sadd.s32 %s37, 1
      %s39 = scalar_select %p36, %s37, %s38
      %p42 = pneg %p36
      %p43 = scmp.eq.s32.totalorder %s13, 1
      %p44 = por %p42, %p43
      %p45 = scmp.ne.s32.totalorder %s37, %s40
      %p46 = scmp.eq.s32.totalorder %s13, 0
      %p47 = por %p45, %p46
      %p48 = scmp.ne.s32.totalorder %s37, %s40
      %p49 = scmp.eq.s32.totalorder %s18, 1
      %p50 = por %p48, %p49
      %p51 = scmp.ne.s32.totalorder %s40, %s41
      %p52 = scmp.eq.s32.totalorder %s18, 0
      %p53 = por %p51, %p52
      %p54 = scmp.ne.s32.totalorder %s40, %s41
      %p55 = scmp.eq.s32.totalorder %s19, 1
      %p56 = por %p54, %p55
      %p58 = scmp.ne.s32.totalorder %s41, %s57
      %p59 = scmp.eq.s32.totalorder %s19, 0
      %p60 = por %p58, %p59
      %s61 = ssub.s32 %s20, %s32
      %s62 = ssub.s32 %s21, %s28
      %s63 = sor.u32 %s61, %s62
      %p64 = scmp.eq.s32.totalorder %s63, 0
      %s66 = sadd.s32 %s65, 1
      %s67 = scalar_select %p64, %s65, %s66
      %p70 = pneg %p64
      %p71 = scmp.eq.s32.totalorder %s13, 1
      %p72 = por %p70, %p71
      %p73 = scmp.ne.s32.totalorder %s65, %s68
      %p74 = scmp.eq.s32.totalorder %s13, 0
      %p75 = por %p73, %p74
      %p76 = scmp.ne.s32.totalorder %s65, %s68
      %p77 = scmp.eq.s32.totalorder %s18, 1
      %p78 = por %p76, %p77
      %p79 = scmp.ne.s32.totalorder %s68, %s69
      %p80 = scmp.eq.s32.totalorder %s18, 0
      %p81 = por %p79, %p80
      %p82 = scmp.ne.s32.totalorder %s68, %s69
      %p83 = scmp.eq.s32.totalorder %s19, 1
      %p84 = por %p82, %p83
      %p86 = scmp.ne.s32.totalorder %s69, %s85
      %p87 = scmp.eq.s32.totalorder %s19, 0
      %p88 = por %p86, %p87
      %p89 = scmp.le.s32.totalorder 1, %s13
      %p90 = scmp.lt.s32.totalorder %s13, 3
      %p91 = pnand %p89, %p90
      %p92 = pneg %p91
      // Predicated region
      $region9: #{tpu_custom_call.1} parent=5 // pred_check
        _
      $region10: #{tpu_custom_call.1} parent=5 // pred_check_branch
        %94 = sbr.rel (%p91) target = $region12
      $region11: #{tpu_custom_call.1} parent=5 // pred_region
        %s95 = ssub.s32 %s13, 1
      $region12: #{tpu_custom_call.1} parent=5 // pred_fallthru
        _
      %p96 = scmp.lt.s32.totalorder %s13, 2
      // Predicated region
      $region13: #{tpu_custom_call.1} parent=5 // pred_check
        %p97 = pneg %p96
      $region14: #{tpu_custom_call.1} parent=5 // pred_check_branch
        %99 = sbr.rel (%p97) target = $region16
      $region15: #{tpu_custom_call.1} parent=5 // pred_region
        // Predicated region
        $region17: #{tpu_custom_call.1} parent=15 // pred_check
          %p100 = pneg %p47
        $region18: #{tpu_custom_call.1} parent=15 // pred_check_branch
          %102 = sbr.rel (%p100) target = $region20
        $region19: #{tpu_custom_call.1} parent=15 // pred_region
          %s103 = sand.u32 %s37, 1
          %s104 = scalar_lea.sflag [#allocation3], %s103
          %s105 = sand.u32 %s37, 1
          %s106 = smul.addr %s105, 8
          %s107 = scalar_lea.vmem [#allocation2], %s106
          %s108 = smul.u32 2, %s21
          %s110 = ssub.s32 128, 128
          %111 = vsyncadd %s104, %s110
          %s112 = smul.addr %s20, 2
          %s113 = sadd.s32 %s108, %s112
          %s114 = smul.addr %s113, 64
          %s115 = scalar_lea.hbm %s0, %s114
          %s117 = sshll.u32 %s107, 4
          %s118 = int_to_ptr.vmem [resolvable:$true] %s117
          %120 = dma.hbm_to_vmem [thread:$0]  %s115, 128, %s118, %s104
        $region20: #{tpu_custom_call.1} parent=15 // pred_fallthru
          _
      $region16: #{tpu_custom_call.1} parent=5 // pred_fallthru
        _
      %p121 = scmp.le.s32.totalorder 1, %s13
      %p122 = scmp.lt.s32.totalorder %s13, 3
      %p123 = pnand %p121, %p122
      %p124 = pneg %p123
      // Predicated region
      $region21: #{tpu_custom_call.1} parent=5 // pred_check
        _
      $region22: #{tpu_custom_call.1} parent=5 // pred_check_branch
        %126 = sbr.rel (%p123) target = $region24
      $region23: #{tpu_custom_call.1} parent=5 // pred_region
        %s127 = ssub.s32 %s13, 1
        %s128 = sand.u32 %s40, 1
        %s129 = scalar_lea.sflag [#allocation3], %s128
        %s130 = sand.u32 %s40, 1
        %s131 = smul.addr %s130, 8
        %s132 = scalar_lea.vmem [#allocation2], %s131
        // Predicated region
        $region25: #{tpu_custom_call.1} parent=23 // pred_check
          %p133 = pneg %p53
        $region26: #{tpu_custom_call.1} parent=23 // pred_check_branch
          %135 = sbr.rel (%p133) target = $region28
        $region27: #{tpu_custom_call.1} parent=23 // pred_region
          %136 = dma.done %s129, 128
        $region28: #{tpu_custom_call.1} parent=23 // pred_fallthru
          _
        %s137 = sand.u32 %s40, 1
        %s138 = scalar_lea.sflag [#allocation3], %s137
        %s139 = sand.u32 %s40, 1
        %s140 = smul.addr %s139, 8
        %s141 = scalar_lea.vmem [#allocation2], %s140
        %p142 = pneg %p53
        %p143 = pneg %p50
        %p144 = pneg %p81
        %p145 = pneg %p78
        %s146 = sand.u32 %s68, 1
        %s147 = scalar_lea.sflag [#allocation4], %s146
        %s148 = sand.u32 %s68, 1
        %s149 = smul.addr %s148, 8
        %s150 = scalar_lea.vmem [#allocation5], %s149
        %s151 = smul.u32 2, %s23
        %v152 = vld [vmem:[%s132] sm:$0xff]
        %v154 = vcombine.high %v152, %v152
        %vm156 = vcmask 1043456
        %v157 = vsel %vm156, %v152, -inf
        %v158 = vrot.slane %v157, 4
        %v159 = vmax.f32 %v157, %v158
        %v160 = vrot.slane %v159, 2
        %v161 = vmax.f32 %v159, %v160
        %v162 = vrot.slane %v161, 1
        %v163 = vmax.f32 %v161, %v162
        %v164 = vsel %vm156, %v154, -inf
        %v165 = vrot.slane %v164, 4
        %v166 = vmax.f32 %v164, %v165
        %v167 = vrot.slane %v166, 2
        %v168 = vmax.f32 %v166, %v167
        %v169 = vrot.slane %v168, 1
        %v170 = vmax.f32 %v168, %v169
        %v173 = vcombine.low %v163, %v170
        %v175 = vsub.f32 %v152, %v173
        %v176 = vmul.f32 %v175, 1.442695
        %v177 = vpow.pop %v176
        %v179 = vcombine.high %v177, %v177
        %v181 = vsel %vm156, %v177, 0.0
        %v182 = vrot.slane %v181, 4
        %v183 = vadd.f32 %v181, %v182
        %v184 = vrot.slane %v183, 2
        %v185 = vadd.f32 %v183, %v184
        %v186 = vrot.slane %v185, 1
        %v187 = vadd.f32 %v185, %v186
        %v188 = vsel %vm156, %v179, 0.0
        %v189 = vrot.slane %v188, 4
        %v190 = vadd.f32 %v188, %v189
        %v191 = vrot.slane %v190, 2
        %v192 = vadd.f32 %v190, %v191
        %v193 = vrot.slane %v192, 1
        %v194 = vadd.f32 %v192, %v193
        %v195 = vmul.f32 %v177, %v175
        %v197 = vcombine.high %v195, %v195
        %v199 = vsel %vm156, %v195, 0.0
        %v200 = vrot.slane %v199, 4
        %v201 = vadd.f32 %v199, %v200
        %v202 = vrot.slane %v201, 2
        %v203 = vadd.f32 %v201, %v202
        %v204 = vrot.slane %v203, 1
        %v205 = vadd.f32 %v203, %v204
        %v206 = vsel %vm156, %v197, 0.0
        %v207 = vrot.slane %v206, 4
        %v208 = vadd.f32 %v206, %v207
        %v209 = vrot.slane %v208, 2
        %v210 = vadd.f32 %v208, %v209
        %v211 = vrot.slane %v210, 1
        %v212 = vadd.f32 %v210, %v211
        %v213 = vlog2.pop %v187
        %v214 = vmul.f32 %v213, 0.6931472
        %v215 = vlog2.pop %v194
        %v216 = vmul.f32 %v215, 0.6931472
        %v217 = vrcp.pop %v187
        %v218 = vrcp.pop %v194
        %v219 = vmul.f32 %v205, %v217
        %v220 = vmul.f32 %v212, %v218
        %v221 = vsub.f32 %v214, %v219
        %v222 = vsub.f32 %v216, %v220
        %v223 = vmul.f32 %v221, %v221
        %v224 = vmul.f32 %v222, %v222
        %v225 = vmul.f32 %v223, 0.11534702
        %v226 = vmul.f32 %v224, 0.11534702
        %v227 = vadd.f32 %v225, 1e-08
        %v228 = vadd.f32 %v226, 1e-08
        %v229 = vmul.f32 %v227, %v227
        %v230 = vmul.f32 %v228, %v228
        %vm231 = vcmask 1040384
        %v232 = vsel %vm231, %v229, 0.0
        %v233 = vsel %vm231, %v230, 0.0
        %v234 = vadd.f32 %v232, %v233
        %235 = vadd.xlane.f32.xlu0 %v234
        %v236 = vpop.xlane.xlu0 %235
        %v237 = vrot.slane %v236, 4
        %v238 = vadd.f32 %v236, %v237
        %v239 = vrot.slane %v238, 2
        %v240 = vadd.f32 %v238, %v239
        %v241 = vrot.slane %v240, 1
        %v242 = vadd.f32 %v240, %v241
        %s243 = vtos %v242
        %v244 = vlaneseq
        %v245 = vshrl.u32 %v244, 7
        %v246 = vlaneseq
        %v247 = vand.u32 %v246, 127
        %vm248 = vcmp.eq.s32.totalorder %v245, 0
        %vm249 = vcmp.eq.s32.totalorder %v247, 0
        %vm250 = vmand %vm248, %vm249
        %v251 = vstv %s243
        %v252 = vsel %vm250, %v251, 0.0
        %253 = vst [vmem:[%s150] sm:$0xff] %v252
        %s254 = sand.u32 %s68, 1
        %s255 = scalar_lea.sflag [#allocation4], %s254
        %s256 = sand.u32 %s68, 1
        %s257 = smul.addr %s256, 8
        %s258 = scalar_lea.vmem [#allocation5], %s257
        // Predicated region
        $region29: #{tpu_custom_call.1} parent=23 // pred_check
          %p259 = pneg %p78
        $region30: #{tpu_custom_call.1} parent=23 // pred_check_branch
          %261 = sbr.rel (%p259) target = $region32
        $region31: #{tpu_custom_call.1} parent=23 // pred_region
          %s263 = ssub.s32 128, 128
          %264 = vsyncadd %s255, %s263
          %s265 = sadd.s32 %s23, %s22
          %s266 = smul.addr %s265, 128
          %s267 = scalar_lea.hbm %s1, %s266
          %s269 = sshll.u32 %s258, 4
          %s270 = int_to_ptr.vmem [resolvable:$true] %s269
          %272 = dma.vmem_to_hbm [thread:$0]  %s270, 128, %s267, %s255
        $region32: #{tpu_custom_call.1} parent=23 // pred_fallthru
          _
      $region24: #{tpu_custom_call.1} parent=5 // pred_fallthru
        _
      %p273 = scmp.le.s32.totalorder 2, %s13
      // Predicated region
      $region33: #{tpu_custom_call.1} parent=5 // pred_check
        %p274 = pneg %p273
      $region34: #{tpu_custom_call.1} parent=5 // pred_check_branch
        %276 = sbr.rel (%p274) target = $region36
      $region35: #{tpu_custom_call.1} parent=5 // pred_region
        %s277 = ssub.s32 %s13, 2
        // Predicated region
        $region37: #{tpu_custom_call.1} parent=35 // pred_check
          %p278 = pneg %p84
        $region38: #{tpu_custom_call.1} parent=35 // pred_check_branch
          %280 = sbr.rel (%p278) target = $region40
        $region39: #{tpu_custom_call.1} parent=35 // pred_region
          %s281 = sand.u32 %s69, 1
          %s282 = scalar_lea.sflag [#allocation4], %s281
          %s283 = sand.u32 %s69, 1
          %s284 = smul.addr %s283, 8
          %s285 = scalar_lea.vmem [#allocation5], %s284
          %286 = dma.done %s282, 128
        $region40: #{tpu_custom_call.1} parent=35 // pred_fallthru
          _
      $region36: #{tpu_custom_call.1} parent=5 // pred_fallthru
        _
    $region6: #{tpu_custom_call.1} parent=1 // loop_footer
      %s17 = sadd.s32 1, %s13
    $region7: #{tpu_custom_call.1} parent=1 // loop_footer_branch
      %12 = sbr.rel target = $region3
    $region8: #{tpu_custom_call.1} parent=1 // loop_exit
      _
    %287 = vsyncpa [#allocation3], 1
    %s288 = scalar_lea.sflag [#allocation3], 1
    %289 = vsyncpa %s288, 1
    %290 = vsyncpa [#allocation4], 1
    %s291 = scalar_lea.sflag [#allocation4], 1
    %292 = vsyncpa %s291, 1

</llo_original>
